<compile_context>
chip_gen: v5e
topology: v5e:2x2
jax: 0.10.0
libtpu: 0.0.40
codegen_flags: <defaults>
</compile_context>

<pallas_src>
import functools

import jax
import jax.numpy as jnp
from jax.experimental import pallas as pl
from jax.experimental.pallas import tpu as pltpu


def _round_up(x, m):
    return ((x + m - 1) // m) * m


def _vmem_capacity_bytes():
    """Physical VMEM per TensorCore; conservative fallback if unqueryable."""
    try:
        cap = int(getattr(pltpu.get_tpu_info(), "vmem_capacity_bytes"))
        if cap > 0:
            return cap
    except Exception:
        pass
    return 64 * 1024 * 1024  # v7x-sized fallback: safe on every generation


def depth_to_space_nhwc_pallas(x_nhwc, block_size):
    """Depth-to-space on NHWC: (N, H, W, C) -> (N, H*bs, W*bs, C // bs**2).

    Preferred entry point for NHWC pipelines: one HBM read + one HBM write,
    no layout transposes.
    """
    bs = int(block_size)
    N, H, W, C = x_nhwc.shape
    assert C % (bs * bs) == 0, "C must be divisible by block_size**2"
    if bs == 1:
        return x_nhwc  # identity

    Cp = C // (bs * bs)
    itemsize = jnp.dtype(x_nhwc.dtype).itemsize
    sub = max(8, 32 // itemsize)  # sublane multiple: 8 (f32) / 16 (bf16) / 32 (int8)

    R = N * H
    x3 = x_nhwc.reshape(R, W, C)  # free merge of (N, H)

    slice_lanes = bs * Cp
    slice_bytes = slice_lanes * itemsize
    # Channel-sliced DMA path only when the slices are lane-aligned AND the
    # per-row HBM read bursts stay long enough (>= 512 B).
    sliced_reads = (slice_lanes % 128 == 0) and (slice_bytes >= 512)

    # ---- VMEM accounting per row of tR (padded to (sublane, 128-lane) tiles) ----
    w_pad = _round_up(W, sub)
    if sliced_reads:
        per_r = itemsize * 2 * w_pad * slice_lanes  # input + output blocks
    else:
        per_r = itemsize * w_pad * (_round_up(C, 128)
                                    + bs * _round_up(slice_lanes, 128))
    per_r_db = 2 * per_r  # double buffering

    cap = _vmem_capacity_bytes()
    budget = (3 * cap) // 8                       # ~48 MiB (v5e/v6e), ~24 MiB (v7x)
    tR = max(1, min(R, budget // max(per_r_db, 1)))
    if R >= 2:
        tR = min(tR, (R + 1) // 2)                # >= 2 grid steps for 2-TC chips
    footprint = per_r_db * tR
    vmem_limit = int(min((3 * cap) // 4,
                         max(32 * 1024 * 1024, footprint + (8 << 20))))

    cost = pl.CostEstimate(flops=0, transcendentals=0,
                           bytes_accessed=2 * R * W * C * itemsize)
    out4_shape = jax.ShapeDtypeStruct((R, bs, W, slice_lanes), x_nhwc.dtype)
    n_r = pl.cdiv(R, tR)

    if sliced_reads:
        # Pure BlockSpec relabeling: grid step (r, b1) DMAs the contiguous
        # channel slice [b1*bs*Cp, (b1+1)*bs*Cp) and copies it into a
        # lane-dense output block.  Each step writes a disjoint block -> both
        # axes are "parallel" (used by v7x's 2 TensorCores; free on v5e/v6e).
        # If profiling shows exposed DMA on v7x, add pipeline_mode=pl.Buffered(3)
        # to these specs (prefer bigger tR first).
        def kernel(x_ref, o_ref):
            o_ref[...] = x_ref[...]

        out4 = pl.pallas_call(
            kernel,
            out_shape=out4_shape,
            grid=(n_r, bs),
            in_specs=[
                pl.BlockSpec((tR, W, slice_lanes), lambda r, b1: (r, 0, b1)),
            ],
            out_specs=pl.BlockSpec((tR, None, W, slice_lanes),
                                   lambda r, b1: (r, b1, 0, 0)),
            compiler_params=pltpu.CompilerParams(
                dimension_semantics=("parallel", "parallel"),
                vmem_limit_bytes=vmem_limit),
            cost_estimate=cost,
        )(x3)
    else:
        # Full-C contiguous reads; per-b1 extraction is a static lane slice
        # (vreg-aligned whenever bs*Cp % 128 == 0).  Every store writes the
        # full last dim of the output block and the block covers the full
        # trailing dims, so the writeback DMA is fully contiguous.
        def kernel(x_ref, o_ref):
            for b1 in range(bs):  # static, bs is tiny
                o_ref[:, b1, :, :] = x_ref[:, :, b1 * slice_lanes:(b1 + 1) * slice_lanes]

        out4 = pl.pallas_call(
            kernel,
            out_shape=out4_shape,
            grid=(n_r,),
            in_specs=[pl.BlockSpec((tR, W, C), lambda r: (r, 0, 0))],
            out_specs=pl.BlockSpec((tR, bs, W, slice_lanes),
                                   lambda r: (r, 0, 0, 0)),
            compiler_params=pltpu.CompilerParams(
                dimension_semantics=("parallel",),
                vmem_limit_bytes=vmem_limit),
            cost_estimate=cost,
        )(x3)

    # (R, bs) -> (N, H*bs) and (W, bs*Cp) -> (W*bs, Cp) are row-major
    # contiguous merges: this reshape is free (no data movement).
    return out4.reshape(N, H * bs, W * bs, Cp)


# Jitted zero-transpose entry for NHWC pipelines.
depth_to_space_nhwc = jax.jit(depth_to_space_nhwc_pallas, static_argnums=1)


@functools.partial(jax.jit, static_argnums=1)
def depth_to_space_pallas(x, block_size):
    """x: (N, C, H, W) -> (N, C//bs**2, H*bs, W*bs), matching the torch module."""
    if block_size == 1:
        return x  # identity: skip the transposes and the kernel entirely
    # TODO(synk): layout glue for the NCHW torch boundary only (2 extra HBM
    # passes); NHWC callers should use depth_to_space_nhwc directly.
    x_nhwc = jnp.transpose(x, (0, 2, 3, 1))
    out_nhwc = depth_to_space_nhwc_pallas(x_nhwc, block_size)
    return jnp.transpose(out_nhwc, (0, 3, 1, 2))


def depth_to_space_ref(x, block_size):
    """Pure-JAX reference, line-for-line port of the torch forward."""
    N, C, H, W = x.shape
    bs = block_size
    Cp = C // (bs * bs)
    x6 = x.reshape(N, bs, bs, Cp, H, W)
    x6 = jnp.transpose(x6, (0, 3, 4, 1, 5, 2))
    return x6.reshape(N, Cp, H * bs, W * bs)


if __name__ == "__main__":
    key = jax.random.PRNGKey(0)

    # 1) Spec-sized test, unaligned channels (bs*Cp = 8) -> general path.
    N, C, H, W, bs = 2, 16, 16, 16, 2
    x = jax.random.normal(key, (N, C, H, W), dtype=jnp.float32)
    out = jax.block_until_ready(depth_to_space_pallas(x, bs))
    ref = depth_to_space_ref(x, bs)
    assert out.shape == ref.shape == (N, C // bs ** 2, H * bs, W * bs)
    assert out.dtype == ref.dtype
    assert jnp.array_equal(out, ref), "mismatch: general path"

    # 2) Lane-aligned long-burst slices (bs*Cp = 256, 1 KiB) -> sliced fast path.
    x2 = jax.random.normal(key, (1, 512, 8, 8), dtype=jnp.float32)
    out2 = jax.block_until_ready(depth_to_space_pallas(x2, 2))
    assert jnp.array_equal(out2, depth_to_space_ref(x2, 2)), "mismatch: fast path"

    # 3) bs = 4, unaligned (bs*Cp = 16) -> general path with longer b1 loop.
    xb = jax.random.normal(key, (1, 64, 8, 8), dtype=jnp.float32)
    assert jnp.array_equal(depth_to_space_pallas(xb, 4),
                           depth_to_space_ref(xb, 4)), "mismatch: bs=4"

    # 4) bf16, lane-aligned but short bursts (bs*Cp = 128 -> 256 B) -> aligned
    #    general path; also exercises dtype-aware VMEM accounting.
    xc = jax.random.normal(key, (1, 256, 8, 8), dtype=jnp.bfloat16)
    assert jnp.array_equal(depth_to_space_pallas(xc, 2),
                           depth_to_space_ref(xc, 2)), "mismatch: bf16 path"

    # 5) bs = 1 identity early-return.
    xd = jax.random.normal(key, (1, 8, 4, 4), dtype=jnp.float32)
    assert jnp.array_equal(depth_to_space_pallas(xd, 1), xd), "mismatch: bs=1"

    # 6) Zero-transpose NHWC entry point (recommended for NHWC pipelines).
    x_nhwc_in = jnp.transpose(x, (0, 2, 3, 1))
    out_nhwc = jax.block_until_ready(depth_to_space_nhwc(x_nhwc_in, bs))
    ref_nhwc = jnp.transpose(ref, (0, 2, 3, 1))
    assert jnp.array_equal(out_nhwc, ref_nhwc), "mismatch: NHWC entry"

    print("KERNEL_OK")
</pallas_src>

<mosaic_0001>
module attributes {stable_mosaic.version = 11 : i64} {
  func.func @kernel(%arg0: i32, %arg1: memref<16x16x16xf32, #tpu.memory_space<vmem>>, %arg2: memref<16x2x16x8xf32, #tpu.memory_space<vmem>>) attributes {dimension_semantics = [#tpu.dimension_semantics<parallel>], iteration_bounds = array<i64: 2>, scalar_prefetch = 0 : i64, scratch_operands = 0 : i64, tpu.core_type = #tpu.core_type<tc>, window_params = [{transform_indices = @transform_0, window_bounds = array<i64: 16, 16, 16>}, {transform_indices = @transform_1, window_bounds = array<i64: 16, 2, 16, 8>}]} {
    %c0 = arith.constant 0 : index
    %c0_0 = arith.constant 0 : index
    %c0_1 = arith.constant 0 : index
    %0 = vector.load %arg1[%c0, %c0_0, %c0_1] : memref<16x16x16xf32, #tpu.memory_space<vmem>>, vector<16x16x8xf32>
    %c0_2 = arith.constant 0 : index
    %c0_3 = arith.constant 0 : index
    %c0_4 = arith.constant 0 : index
    %c0_5 = arith.constant 0 : index
    %1 = vector.load %arg2[%c0_2, %c0_3, %c0_4, %c0_5] : memref<16x2x16x8xf32, #tpu.memory_space<vmem>>, vector<16x1x16x8xf32>
    %2 = vector.shape_cast %1 : vector<16x1x16x8xf32> to vector<16x16x8xf32>
    %3 = vector.shape_cast %0 : vector<16x16x8xf32> to vector<16x1x16x8xf32>
    tpu.vector_store %arg2[%c0_2, %c0_3, %c0_4, %c0_5], %3 {strides = array<i32>} : memref<16x2x16x8xf32, #tpu.memory_space<vmem>>, vector<16x1x16x8xf32>,
    %c0_6 = arith.constant 0 : index
    %c0_7 = arith.constant 0 : index
    %c8 = arith.constant 8 : index
    %4 = vector.load %arg1[%c0_6, %c0_7, %c8] : memref<16x16x16xf32, #tpu.memory_space<vmem>>, vector<16x16x8xf32>
    %c0_8 = arith.constant 0 : index
    %c1 = arith.constant 1 : index
    %c0_9 = arith.constant 0 : index
    %c0_10 = arith.constant 0 : index
    %5 = vector.load %arg2[%c0_8, %c1, %c0_9, %c0_10] : memref<16x2x16x8xf32, #tpu.memory_space<vmem>>, vector<16x1x16x8xf32>
    %6 = vector.shape_cast %5 : vector<16x1x16x8xf32> to vector<16x16x8xf32>
    %7 = vector.shape_cast %4 : vector<16x16x8xf32> to vector<16x1x16x8xf32>
    tpu.vector_store %arg2[%c0_8, %c1, %c0_9, %c0_10], %7 {strides = array<i32>} : memref<16x2x16x8xf32, #tpu.memory_space<vmem>>, vector<16x1x16x8xf32>,
    return
  }
  func.func @transform_0(%arg0: i32) -> (i32, i32, i32) {
    %c0_i32 = arith.constant 0 : i32
    %c0_i32_0 = arith.constant 0 : i32
    %c0_i32_1 = arith.constant 0 : i32
    return %arg0, %c0_i32, %c0_i32_0 : i32, i32, i32
  }
  func.func @transform_1(%arg0: i32) -> (i32, i32, i32, i32) {
    %c0_i32 = arith.constant 0 : i32
    %c0_i32_0 = arith.constant 0 : i32
    %c0_i32_1 = arith.constant 0 : i32
    %c0_i32_2 = arith.constant 0 : i32
    return %arg0, %c0_i32, %c0_i32_0, %c0_i32_1 : i32, i32, i32, i32
  }
}

</mosaic_0001>

<llo_original>
// kernel: depth_to_space_pallas.1
$region0: #{depth_to_space_pallas.1}
  #allocation0 [shape = 'u32[]', space=smem, size = 0x4, offset = 0x4, fixed_abs, tag = 'smem constant byte address 0x4 - core index']
  #allocation1 [shape = 'u32[72,128]{1,0:T(1,128)}', space=vmem, size = 0x9000, scoped, tag = 'internal scratch']
  %s0 = inlined_call_operand.vmem [shape: f32[32,16,16], index: 0, kind: input, shape index: {}]
  %s1 = inlined_call_operand.vmem [shape: f32[32,2,16,8], index: 1, kind: output, shape index: {}]
  %s2 = sld [smem:[#allocation0]]
  $region37: #{depth_to_space_pallas.1} parent=0
    _
  %s4 = ssub.s32 1, %s2
  %s5 = scalar_select 0, %s4, %s2
  loop: start=0, step=1, limit=4
  $region2: #{depth_to_space_pallas.1} parent=0 // loop_pre_header
    _
  $region3: #{depth_to_space_pallas.1} parent=0 // loop_header
    %s7 = sphi 0, %s11
    %p8 = scmp.ge.s32.totalorder %s7, 4
    %s17 = sphi 0, %s19
    %s20 = sphi 0, %s17
    %s21 = sphi 0, %s20
    %s37 = sphi 0, %s21
    %s43 = sphi 0, %s45
    %s46 = sphi 0, %s43
    %s47 = sphi 0, %s46
    %s63 = sphi 0, %s47
  $region4: #{depth_to_space_pallas.1} parent=0 // loop_header_branch
    %10 = sbr.rel (%p8) target = $region8
  $region5: #{depth_to_space_pallas.1} parent=0 // loop_body
    %s12 = ssub.s32 %s7, 1
    %s13 = ssub.s32 %s7, 2
    %s14 = sadd.s32 %s7, 1
    %s15 = ssub.s32 %s7, %s14
    %p16 = scmp.eq.s32.totalorder %s15, 0
    %s18 = sadd.s32 %s17, 1
    %s19 = scalar_select %p16, %s17, %s18
    %p22 = pneg %p16
    %p23 = scmp.eq.s32.totalorder %s7, 1
    %p24 = por %p22, %p23
    %p25 = scmp.ne.s32.totalorder %s17, %s20
    %p26 = scmp.eq.s32.totalorder %s7, 0
    %p27 = por %p25, %p26
    %p28 = scmp.ne.s32.totalorder %s17, %s20
    %p29 = scmp.eq.s32.totalorder %s12, 1
    %p30 = por %p28, %p29
    %p31 = scmp.ne.s32.totalorder %s20, %s21
    %p32 = scmp.eq.s32.totalorder %s12, 0
    %p33 = por %p31, %p32
    %p34 = scmp.ne.s32.totalorder %s20, %s21
    %p35 = scmp.eq.s32.totalorder %s13, 1
    %p36 = por %p34, %p35
    %p38 = scmp.ne.s32.totalorder %s21, %s37
    %p39 = scmp.eq.s32.totalorder %s13, 0
    %p40 = por %p38, %p39
    %s41 = ssub.s32 %s7, %s14
    %p42 = scmp.eq.s32.totalorder %s41, 0
    %s44 = sadd.s32 %s43, 1
    %s45 = scalar_select %p42, %s43, %s44
    %p48 = pneg %p42
    %p49 = scmp.eq.s32.totalorder %s7, 1
    %p50 = por %p48, %p49
    %p51 = scmp.ne.s32.totalorder %s43, %s46
    %p52 = scmp.eq.s32.totalorder %s7, 0
    %p53 = por %p51, %p52
    %p54 = scmp.ne.s32.totalorder %s43, %s46
    %p55 = scmp.eq.s32.totalorder %s12, 1
    %p56 = por %p54, %p55
    %p57 = scmp.ne.s32.totalorder %s46, %s47
    %p58 = scmp.eq.s32.totalorder %s12, 0
    %p59 = por %p57, %p58
    %p60 = scmp.ne.s32.totalorder %s46, %s47
    %p61 = scmp.eq.s32.totalorder %s13, 1
    %p62 = por %p60, %p61
    %p64 = scmp.ne.s32.totalorder %s47, %s63
    %p65 = scmp.eq.s32.totalorder %s13, 0
    %p66 = por %p64, %p65
    %p67 = scmp.le.s32.totalorder 1, %s7
    %p68 = scmp.lt.s32.totalorder %s7, 3
    %p69 = pnand %p67, %p68
    %p70 = pneg %p69
    // Predicated region
    $region9: #{depth_to_space_pallas.1} parent=5 // pred_check
      _
    $region10: #{depth_to_space_pallas.1} parent=5 // pred_check_branch
      %72 = sbr.rel (%p69) target = $region12
    $region11: #{depth_to_space_pallas.1} parent=5 // pred_region
      %s73 = ssub.s32 %s7, 1
    $region12: #{depth_to_space_pallas.1} parent=5 // pred_fallthru
      _
    %p74 = scmp.lt.s32.totalorder %s7, 2
    // Predicated region
    $region13: #{depth_to_space_pallas.1} parent=5 // pred_check
      %p75 = pneg %p74
    $region14: #{depth_to_space_pallas.1} parent=5 // pred_check_branch
      %77 = sbr.rel (%p75) target = $region16
    $region15: #{depth_to_space_pallas.1} parent=5 // pred_region
      // Predicated region
      $region17: #{depth_to_space_pallas.1} parent=15 // pred_check
        %p78 = pneg %p27
      $region18: #{depth_to_space_pallas.1} parent=15 // pred_check_branch
        %80 = sbr.rel (%p78) target = $region20
      $region19: #{depth_to_space_pallas.1} parent=15 // pred_region
        %s81 = smul.u32 16, %s7
        %p82 = scmp.lt.s32.totalorder %s81, 31
        %s83 = scalar_select %p82, %s81, 31
        %s84 = smul.addr %s83, 2
        %s85 = smul.addr %s84, 8
        %s86 = scalar_lea.vmem %s0, %s85
        %s87 = smul.u32 16, %s7
      $region20: #{depth_to_space_pallas.1} parent=15 // pred_fallthru
        _
    $region16: #{depth_to_space_pallas.1} parent=5 // pred_fallthru
      _
    %p88 = scmp.le.s32.totalorder 1, %s7
    %p89 = scmp.lt.s32.totalorder %s7, 3
    %p90 = pnand %p88, %p89
    %p91 = pneg %p90
    // Predicated region
    $region21: #{depth_to_space_pallas.1} parent=5 // pred_check
      _
    $region22: #{depth_to_space_pallas.1} parent=5 // pred_check_branch
      %93 = sbr.rel (%p90) target = $region24
    $region23: #{depth_to_space_pallas.1} parent=5 // pred_region
      %s94 = ssub.s32 %s7, 1
      %s95 = smul.u32 16, %s12
      %p96 = scmp.lt.s32.totalorder %s95, 31
      %s97 = scalar_select %p96, %s95, 31
      %s98 = smul.addr %s97, 2
      %s99 = smul.addr %s98, 8
      %s100 = scalar_lea.vmem %s0, %s99
      %p101 = pneg %p33
      %p102 = pneg %p30
      %p103 = pneg %p59
      %p104 = pneg %p56
      %s105 = smul.u32 16, %s12
      %p106 = scmp.lt.s32.totalorder %s105, 31
      %s107 = scalar_select %p106, %s105, 31
      %s108 = smul.addr %s107, 4
      %s109 = smul.addr %s108, 8
      %s110 = scalar_lea.vmem %s1, %s109
      %s111 = smul.u32 16, %s12
      %p112 = scmp.lt.s32.totalorder %s111, 31
      %s113 = scalar_select %p112, %s111, 31
      %s114 = smul.addr %s113, 2
      %s115 = smul.addr %s114, 8
      %s116 = scalar_lea.vmem %s0, %s115
      %s117 = smul.u32 16, %s12
      %s118 = smul.u32 16, %s12
      %p119 = scmp.lt.s32.totalorder %s118, 31
      %s120 = scalar_select %p119, %s118, 31
      %s121 = smul.addr %s120, 4
      %s122 = smul.addr %s121, 8
      %s123 = scalar_lea.vmem %s1, %s122
      %s124 = smul.u32 16, %s12
      %v125 = vld [vmem:[%s116] sm:$0xff]
      %v126 = vld [vmem:[%s116 + $0x8] sm:$0xff]
      %v127 = vld [vmem:[%s116 + $0x10] sm:$0xff]
      %v128 = vld [vmem:[%s116 + $0x18] sm:$0xff]
      %v129 = vld [vmem:[%s116 + $0x20] sm:$0xff]
      %v130 = vld [vmem:[%s116 + $0x28] sm:$0xff]
      %v131 = vld [vmem:[%s116 + $0x30] sm:$0xff]
      %v132 = vld [vmem:[%s116 + $0x38] sm:$0xff]
      %v133 = vld [vmem:[%s116 + $0x40] sm:$0xff]
      %v134 = vld [vmem:[%s116 + $0x48] sm:$0xff]
      %v135 = vld [vmem:[%s116 + $0x50] sm:$0xff]
      %v136 = vld [vmem:[%s116 + $0x58] sm:$0xff]
      %v137 = vld [vmem:[%s116 + $0x60] sm:$0xff]
      %v138 = vld [vmem:[%s116 + $0x68] sm:$0xff]
      %v139 = vld [vmem:[%s116 + $0x70] sm:$0xff]
      %v140 = vld [vmem:[%s116 + $0x78] sm:$0xff]
      %v141 = vld [vmem:[%s116 + $0x80] sm:$0xff]
      %v142 = vld [vmem:[%s116 + $0x88] sm:$0xff]
      %v143 = vld [vmem:[%s116 + $0x90] sm:$0xff]
      %v144 = vld [vmem:[%s116 + $0x98] sm:$0xff]
      %v145 = vld [vmem:[%s116 + $0xa0] sm:$0xff]
      %v146 = vld [vmem:[%s116 + $0xa8] sm:$0xff]
      %v147 = vld [vmem:[%s116 + $0xb0] sm:$0xff]
      %v148 = vld [vmem:[%s116 + $0xb8] sm:$0xff]
      %v149 = vld [vmem:[%s116 + $0xc0] sm:$0xff]
      %v150 = vld [vmem:[%s116 + $0xc8] sm:$0xff]
      %v151 = vld [vmem:[%s116 + $0xd0] sm:$0xff]
      %v152 = vld [vmem:[%s116 + $0xd8] sm:$0xff]
      %v153 = vld [vmem:[%s116 + $0xe0] sm:$0xff]
      %v154 = vld [vmem:[%s116 + $0xe8] sm:$0xff]
      %v155 = vld [vmem:[%s116 + $0xf0] sm:$0xff]
      %v156 = vld [vmem:[%s116 + $0xf8] sm:$0xff]
      %vm157 = vcmask 64512
      %158 = vst.msk [vmem:[%s123] sm:$0xff] %vm157, %v125
      %159 = vst.msk [vmem:[%s123 + $0x8] sm:$0xff] %vm157, %v126
      %160 = vst.msk [vmem:[%s123 + $0x20] sm:$0xff] %vm157, %v127
      %161 = vst.msk [vmem:[%s123 + $0x28] sm:$0xff] %vm157, %v128
      %162 = vst.msk [vmem:[%s123 + $0x40] sm:$0xff] %vm157, %v129
      %163 = vst.msk [vmem:[%s123 + $0x48] sm:$0xff] %vm157, %v130
      %164 = vst.msk [vmem:[%s123 + $0x60] sm:$0xff] %vm157, %v131
      %165 = vst.msk [vmem:[%s123 + $0x68] sm:$0xff] %vm157, %v132
      %166 = vst.msk [vmem:[%s123 + $0x80] sm:$0xff] %vm157, %v133
      %167 = vst.msk [vmem:[%s123 + $0x88] sm:$0xff] %vm157, %v134
      %168 = vst.msk [vmem:[%s123 + $0xa0] sm:$0xff] %vm157, %v135
      %169 = vst.msk [vmem:[%s123 + $0xa8] sm:$0xff] %vm157, %v136
      %170 = vst.msk [vmem:[%s123 + $0xc0] sm:$0xff] %vm157, %v137
      %171 = vst.msk [vmem:[%s123 + $0xc8] sm:$0xff] %vm157, %v138
      %172 = vst.msk [vmem:[%s123 + $0xe0] sm:$0xff] %vm157, %v139
      %173 = vst.msk [vmem:[%s123 + $0xe8] sm:$0xff] %vm157, %v140
      %174 = vst.msk [vmem:[%s123 + $0x100] sm:$0xff] %vm157, %v141
      %175 = vst.msk [vmem:[%s123 + $0x108] sm:$0xff] %vm157, %v142
      %176 = vst.msk [vmem:[%s123 + $0x120] sm:$0xff] %vm157, %v143
      %177 = vst.msk [vmem:[%s123 + $0x128] sm:$0xff] %vm157, %v144
      %178 = vst.msk [vmem:[%s123 + $0x140] sm:$0xff] %vm157, %v145
      %179 = vst.msk [vmem:[%s123 + $0x148] sm:$0xff] %vm157, %v146
      %180 = vst.msk [vmem:[%s123 + $0x160] sm:$0xff] %vm157, %v147
      %181 = vst.msk [vmem:[%s123 + $0x168] sm:$0xff] %vm157, %v148
      %182 = vst.msk [vmem:[%s123 + $0x180] sm:$0xff] %vm157, %v149
      %183 = vst.msk [vmem:[%s123 + $0x188] sm:$0xff] %vm157, %v150
      %184 = vst.msk [vmem:[%s123 + $0x1a0] sm:$0xff] %vm157, %v151
      %185 = vst.msk [vmem:[%s123 + $0x1a8] sm:$0xff] %vm157, %v152
      %186 = vst.msk [vmem:[%s123 + $0x1c0] sm:$0xff] %vm157, %v153
      %187 = vst.msk [vmem:[%s123 + $0x1c8] sm:$0xff] %vm157, %v154
      %188 = vst.msk [vmem:[%s123 + $0x1e0] sm:$0xff] %vm157, %v155
      %189 = vst.msk [vmem:[%s123 + $0x1e8] sm:$0xff] %vm157, %v156
      %v190 = vld [vmem:[%s116] sm:$0xff]
      %v191 = vld [vmem:[%s116 + $0x8] sm:$0xff]
      %v192 = vld [vmem:[%s116 + $0x10] sm:$0xff]
      %v193 = vld [vmem:[%s116 + $0x18] sm:$0xff]
      %v194 = vld [vmem:[%s116 + $0x20] sm:$0xff]
      %v195 = vld [vmem:[%s116 + $0x28] sm:$0xff]
      %v196 = vld [vmem:[%s116 + $0x30] sm:$0xff]
      %v197 = vld [vmem:[%s116 + $0x38] sm:$0xff]
      %v198 = vld [vmem:[%s116 + $0x40] sm:$0xff]
      %v199 = vld [vmem:[%s116 + $0x48] sm:$0xff]
      %v200 = vld [vmem:[%s116 + $0x50] sm:$0xff]
      %v201 = vld [vmem:[%s116 + $0x58] sm:$0xff]
      %v202 = vld [vmem:[%s116 + $0x60] sm:$0xff]
      %v203 = vld [vmem:[%s116 + $0x68] sm:$0xff]
      %v204 = vld [vmem:[%s116 + $0x70] sm:$0xff]
      %v205 = vld [vmem:[%s116 + $0x78] sm:$0xff]
      %v206 = vld [vmem:[%s116 + $0x80] sm:$0xff]
      %v207 = vld [vmem:[%s116 + $0x88] sm:$0xff]
      %v208 = vld [vmem:[%s116 + $0x90] sm:$0xff]
      %v209 = vld [vmem:[%s116 + $0x98] sm:$0xff]
      %v210 = vld [vmem:[%s116 + $0xa0] sm:$0xff]
      %v211 = vld [vmem:[%s116 + $0xa8] sm:$0xff]
      %v212 = vld [vmem:[%s116 + $0xb0] sm:$0xff]
      %v213 = vld [vmem:[%s116 + $0xb8] sm:$0xff]
      %v214 = vld [vmem:[%s116 + $0xc0] sm:$0xff]
      %v215 = vld [vmem:[%s116 + $0xc8] sm:$0xff]
      %v216 = vld [vmem:[%s116 + $0xd0] sm:$0xff]
      %v217 = vld [vmem:[%s116 + $0xd8] sm:$0xff]
      %v218 = vld [vmem:[%s116 + $0xe0] sm:$0xff]
      %v219 = vld [vmem:[%s116 + $0xe8] sm:$0xff]
      %v220 = vld [vmem:[%s116 + $0xf0] sm:$0xff]
      %v221 = vld [vmem:[%s116 + $0xf8] sm:$0xff]
      %254 = vrot.lane.b32.xlu0 %v190, 120
      %v255 = vpop.permute.xlu0 %254
      %256 = vrot.lane.b32.xlu0 %v191, 120
      %v257 = vpop.permute.xlu0 %256
      %258 = vrot.lane.b32.xlu0 %v192, 120
      %v259 = vpop.permute.xlu0 %258
      %260 = vrot.lane.b32.xlu0 %v193, 120
      %v261 = vpop.permute.xlu0 %260
      %262 = vrot.lane.b32.xlu0 %v194, 120
      %v263 = vpop.permute.xlu0 %262
      %264 = vrot.lane.b32.xlu0 %v195, 120
      %v265 = vpop.permute.xlu0 %264
      %266 = vrot.lane.b32.xlu0 %v196, 120
      %v267 = vpop.permute.xlu0 %266
      %268 = vrot.lane.b32.xlu0 %v197, 120
      %v269 = vpop.permute.xlu0 %268
      %270 = vrot.lane.b32.xlu0 %v198, 120
      %v271 = vpop.permute.xlu0 %270
      %272 = vrot.lane.b32.xlu0 %v199, 120
      %v273 = vpop.permute.xlu0 %272
      %274 = vrot.lane.b32.xlu0 %v200, 120
      %v275 = vpop.permute.xlu0 %274
      %276 = vrot.lane.b32.xlu0 %v201, 120
      %v277 = vpop.permute.xlu0 %276
      %278 = vrot.lane.b32.xlu0 %v202, 120
      %v279 = vpop.permute.xlu0 %278
      %280 = vrot.lane.b32.xlu0 %v203, 120
      %v281 = vpop.permute.xlu0 %280
      %282 = vrot.lane.b32.xlu0 %v204, 120
      %v283 = vpop.permute.xlu0 %282
      %284 = vrot.lane.b32.xlu0 %v205, 120
      %v285 = vpop.permute.xlu0 %284
      %286 = vrot.lane.b32.xlu0 %v206, 120
      %v287 = vpop.permute.xlu0 %286
      %288 = vrot.lane.b32.xlu0 %v207, 120
      %v289 = vpop.permute.xlu0 %288
      %290 = vrot.lane.b32.xlu0 %v208, 120
      %v291 = vpop.permute.xlu0 %290
      %292 = vrot.lane.b32.xlu0 %v209, 120
      %v293 = vpop.permute.xlu0 %292
      %294 = vrot.lane.b32.xlu0 %v210, 120
      %v295 = vpop.permute.xlu0 %294
      %296 = vrot.lane.b32.xlu0 %v211, 120
      %v297 = vpop.permute.xlu0 %296
      %298 = vrot.lane.b32.xlu0 %v212, 120
      %v299 = vpop.permute.xlu0 %298
      %300 = vrot.lane.b32.xlu0 %v213, 120
      %v301 = vpop.permute.xlu0 %300
      %302 = vrot.lane.b32.xlu0 %v214, 120
      %v303 = vpop.permute.xlu0 %302
      %304 = vrot.lane.b32.xlu0 %v215, 120
      %v305 = vpop.permute.xlu0 %304
      %306 = vrot.lane.b32.xlu0 %v216, 120
      %v307 = vpop.permute.xlu0 %306
      %308 = vrot.lane.b32.xlu0 %v217, 120
      %v309 = vpop.permute.xlu0 %308
      %310 = vrot.lane.b32.xlu0 %v218, 120
      %v311 = vpop.permute.xlu0 %310
      %312 = vrot.lane.b32.xlu0 %v219, 120
      %v313 = vpop.permute.xlu0 %312
      %314 = vrot.lane.b32.xlu0 %v220, 120
      %v315 = vpop.permute.xlu0 %314
      %316 = vrot.lane.b32.xlu0 %v221, 120
      %v317 = vpop.permute.xlu0 %316
      %s350 = scalar_lea.vmem %s123, 16
      %351 = vst.msk [vmem:[%s350] sm:$0xff] %vm157, %v255
      %352 = vst.msk [vmem:[%s350 + $0x8] sm:$0xff] %vm157, %v257
      %353 = vst.msk [vmem:[%s350 + $0x20] sm:$0xff] %vm157, %v259
      %354 = vst.msk [vmem:[%s350 + $0x28] sm:$0xff] %vm157, %v261
      %355 = vst.msk [vmem:[%s350 + $0x40] sm:$0xff] %vm157, %v263
      %356 = vst.msk [vmem:[%s350 + $0x48] sm:$0xff] %vm157, %v265
      %357 = vst.msk [vmem:[%s350 + $0x60] sm:$0xff] %vm157, %v267
      %358 = vst.msk [vmem:[%s350 + $0x68] sm:$0xff] %vm157, %v269
      %359 = vst.msk [vmem:[%s350 + $0x80] sm:$0xff] %vm157, %v271
      %360 = vst.msk [vmem:[%s350 + $0x88] sm:$0xff] %vm157, %v273
      %361 = vst.msk [vmem:[%s350 + $0xa0] sm:$0xff] %vm157, %v275
      %362 = vst.msk [vmem:[%s350 + $0xa8] sm:$0xff] %vm157, %v277
      %363 = vst.msk [vmem:[%s350 + $0xc0] sm:$0xff] %vm157, %v279
      %364 = vst.msk [vmem:[%s350 + $0xc8] sm:$0xff] %vm157, %v281
      %365 = vst.msk [vmem:[%s350 + $0xe0] sm:$0xff] %vm157, %v283
      %366 = vst.msk [vmem:[%s350 + $0xe8] sm:$0xff] %vm157, %v285
      %367 = vst.msk [vmem:[%s350 + $0x100] sm:$0xff] %vm157, %v287
      %368 = vst.msk [vmem:[%s350 + $0x108] sm:$0xff] %vm157, %v289
      %369 = vst.msk [vmem:[%s350 + $0x120] sm:$0xff] %vm157, %v291
      %370 = vst.msk [vmem:[%s350 + $0x128] sm:$0xff] %vm157, %v293
      %371 = vst.msk [vmem:[%s350 + $0x140] sm:$0xff] %vm157, %v295
      %372 = vst.msk [vmem:[%s350 + $0x148] sm:$0xff] %vm157, %v297
      %373 = vst.msk [vmem:[%s350 + $0x160] sm:$0xff] %vm157, %v299
      %374 = vst.msk [vmem:[%s350 + $0x168] sm:$0xff] %vm157, %v301
      %375 = vst.msk [vmem:[%s350 + $0x180] sm:$0xff] %vm157, %v303
      %376 = vst.msk [vmem:[%s350 + $0x188] sm:$0xff] %vm157, %v305
      %377 = vst.msk [vmem:[%s350 + $0x1a0] sm:$0xff] %vm157, %v307
      %378 = vst.msk [vmem:[%s350 + $0x1a8] sm:$0xff] %vm157, %v309
      %379 = vst.msk [vmem:[%s350 + $0x1c0] sm:$0xff] %vm157, %v311
      %380 = vst.msk [vmem:[%s350 + $0x1c8] sm:$0xff] %vm157, %v313
      %381 = vst.msk [vmem:[%s350 + $0x1e0] sm:$0xff] %vm157, %v315
      %382 = vst.msk [vmem:[%s350 + $0x1e8] sm:$0xff] %vm157, %v317
      %s383 = smul.u32 16, %s12
      %p384 = scmp.lt.s32.totalorder %s383, 31
      %s385 = scalar_select %p384, %s383, 31
      %s386 = smul.addr %s385, 4
      %s387 = smul.addr %s386, 8
      %s388 = scalar_lea.vmem %s1, %s387
      // Predicated region
      $region25: #{depth_to_space_pallas.1} parent=23 // pred_check
        %p389 = pneg %p56
      $region26: #{depth_to_space_pallas.1} parent=23 // pred_check_branch
        %391 = sbr.rel (%p389) target = $region28
      $region27: #{depth_to_space_pallas.1} parent=23 // pred_region
        %s392 = smul.u32 16, %s12
      $region28: #{depth_to_space_pallas.1} parent=23 // pred_fallthru
        _
    $region24: #{depth_to_space_pallas.1} parent=5 // pred_fallthru
      _
    %p393 = scmp.le.s32.totalorder 2, %s7
    // Predicated region
    $region29: #{depth_to_space_pallas.1} parent=5 // pred_check
      %p394 = pneg %p393
    $region30: #{depth_to_space_pallas.1} parent=5 // pred_check_branch
      %396 = sbr.rel (%p394) target = $region32
    $region31: #{depth_to_space_pallas.1} parent=5 // pred_region
      %s397 = ssub.s32 %s7, 2
      // Predicated region
      $region33: #{depth_to_space_pallas.1} parent=31 // pred_check
        %p398 = pneg %p62
      $region34: #{depth_to_space_pallas.1} parent=31 // pred_check_branch
        %400 = sbr.rel (%p398) target = $region36
      $region35: #{depth_to_space_pallas.1} parent=31 // pred_region
        %s401 = smul.u32 16, %s13
        %p402 = scmp.lt.s32.totalorder %s401, 31
        %s403 = scalar_select %p402, %s401, 31
        %s404 = smul.addr %s403, 4
        %s405 = smul.addr %s404, 8
        %s406 = scalar_lea.vmem %s1, %s405
      $region36: #{depth_to_space_pallas.1} parent=31 // pred_fallthru
        _
    $region32: #{depth_to_space_pallas.1} parent=5 // pred_fallthru
      _
  $region6: #{depth_to_space_pallas.1} parent=0 // loop_footer
    %s11 = sadd.s32 1, %s7
  $region7: #{depth_to_space_pallas.1} parent=0 // loop_footer_branch
    %6 = sbr.rel target = $region3
  $region8: #{depth_to_space_pallas.1} parent=0 // loop_exit
    _

</llo_original>
